<compile_context>
chip_gen: v5e
topology: v5e:2x2
jax: 0.10.0
libtpu: 0.0.40
codegen_flags: <defaults>
</compile_context>

<pallas_src>
import functools

import jax
import jax.numpy as jnp
from jax import lax
from jax.experimental import pallas as pl
from jax.experimental.pallas import tpu as pltpu


# ---------------------------------------------------------------------------
# Kernel: one frame tile of one batch element per grid step.
#   x_ref:   (tf, L)               input frames of this tile (raw, no padding)
#   out_ref: (n_out_chunks, hop)   per-batch output block (resident across f)
#   acc_ref: (n_acc_chunks, hop)   float32 chunk accumulator (VMEM scratch)
# ---------------------------------------------------------------------------
def _ola_kernel(x_ref, out_ref, acc_ref, *, hop, L, tf, k, n_frame,
                need_mask, fuse_trim, trim_chunks, n_out_chunks):
    f = pl.program_id(1)
    last_f = pl.num_programs(1) - 1

    @pl.when(f == 0)
    def _zero():
        acc_ref[...] = jnp.zeros_like(acc_ref)

    base = pl.multiple_of(f * tf, tf)      # first output chunk touched by this tile
    if need_mask:
        valid = n_frame - f * tf           # frames actually present in this tile

    # k = ceil(L / hop) is small and static -> unrolled. Per-chunk loads keep vreg
    # pressure at one (tf, hop) slab instead of the whole (tf, L) tile.
    for j in range(k):
        w = hop if j < k - 1 else L - (k - 1) * hop
        chunk = x_ref[:, j * hop:j * hop + w].astype(jnp.float32)
        if need_mask:
            rows = lax.broadcasted_iota(jnp.int32, (tf, w), 0)
            chunk = jnp.where(rows < valid, chunk, 0.0)   # zero OOB tail frames
        sl = pl.ds(base + j, tf)
        acc_ref[sl, :w] = acc_ref[sl, :w] + chunk

    @pl.when(f == last_f)
    def _write():
        if fuse_trim:
            out_ref[...] = acc_ref[trim_chunks:trim_chunks + n_out_chunks,
                                   :].astype(out_ref.dtype)
        else:
            out_ref[...] = acc_ref[:n_out_chunks, :].astype(out_ref.dtype)


# ---------------------------------------------------------------------------
# Wrapper: pallas_call setup, optional fallback trim (exact PyTorch semantics).
# ---------------------------------------------------------------------------
def ola_forward(x, n_fft, n_hop, max_tile_frames=512):
    """x: (B, n_frame, L). Returns (B, (n_frame-1)*n_hop + L - 2*(n_fft-n_hop))."""
    B, n_frame, L = x.shape
    hop = int(n_hop)
    n_overlap = int(n_fft) - hop
    assert n_overlap > 0, "OLA requires n_hop < n_fft (same assumption as the torch module)"
    out_len = (n_frame - 1) * hop + L
    trim_len = out_len - 2 * n_overlap
    assert trim_len > 0, "trimmed output would be empty"

    k = -(-L // hop)                                   # chunks per frame
    mtf = max(8, (int(max_tile_frames) // 8) * 8)      # tile cap, multiple of 8
    if n_frame <= mtf:
        tf = n_frame          # full-dim block (allowed regardless of 8-divisibility)
    else:
        tf = mtf              # multiple of 8; tail frames masked in-kernel
    n_tiles = -(-n_frame // tf)
    need_mask = (n_frame % tf) != 0
    n_acc_chunks = n_tiles * tf + k - 1                # covers every chunk any slab touches

    # Fuse the trim when its boundaries land on chunk edges (DTLN fast path).
    fuse_trim = (L % hop == 0) and (n_overlap % hop == 0)
    if fuse_trim:
        trim_chunks = n_overlap // hop
        n_out_chunks = trim_len // hop
    else:
        trim_chunks = 0
        n_out_chunks = n_frame + k - 1                 # untrimmed; wrapper slices after

    isz = x.dtype.itemsize
    vmem_needed = (2 * tf * L * isz                    # double-buffered input tile
                   + 2 * n_out_chunks * hop * isz      # double-buffered output block
                   + n_acc_chunks * hop * 4)           # f32 accumulator scratch
    vmem_limit = int(min(60 << 20, max(2 * vmem_needed + (2 << 20), 16 << 20)))

    kernel = functools.partial(
        _ola_kernel, hop=hop, L=L, tf=tf, k=k, n_frame=n_frame,
        need_mask=need_mask, fuse_trim=fuse_trim, trim_chunks=trim_chunks,
        n_out_chunks=n_out_chunks)

    out_chunks = pl.pallas_call(
        kernel,
        out_shape=jax.ShapeDtypeStruct((B, n_out_chunks, hop), x.dtype),
        grid_spec=pltpu.PrefetchScalarGridSpec(
            num_scalar_prefetch=0,
            grid=(B, n_tiles),
            in_specs=[pl.BlockSpec((None, tf, L), lambda b, f: (b, f, 0))],
            out_specs=pl.BlockSpec((None, n_out_chunks, hop), lambda b, f: (b, 0, 0)),
            scratch_shapes=[pltpu.VMEM((n_acc_chunks, hop), jnp.float32)],
        ),
        compiler_params=pltpu.CompilerParams(
            dimension_semantics=("parallel", "arbitrary"),
            vmem_limit_bytes=vmem_limit),
        cost_estimate=pl.CostEstimate(
            flops=B * n_frame * L,
            transcendentals=0,
            bytes_accessed=isz * B * (n_frame * L + n_out_chunks * hop)),
    )(x)

    if fuse_trim:
        return out_chunks.reshape(B, n_out_chunks * hop)
    flat = out_chunks.reshape(B, n_out_chunks * hop)
    return flat[:, n_overlap:out_len - n_overlap]


# ---------------------------------------------------------------------------
# Pure-JAX reference for validation.
# ---------------------------------------------------------------------------
def _ref_ola(x, n_fft, n_hop):
    B, n_frame, L = x.shape
    out_len = (n_frame - 1) * n_hop + L
    out = jnp.zeros((B, out_len), jnp.float32)
    for i in range(n_frame):
        out = out.at[:, i * n_hop:i * n_hop + L].add(x[:, i, :].astype(jnp.float32))
    n_overlap = n_fft - n_hop
    return out[:, n_overlap:out_len - n_overlap].astype(x.dtype)


if __name__ == "__main__":
    key = jax.random.PRNGKey(0)
    fwd = jax.jit(ola_forward, static_argnums=(1, 2, 3))
    configs = [
        # (B, n_frame, n_fft, n_hop, max_tile_frames)
        (2, 16, 512, 128, 512),   # DTLN config: fused trim, single tile, lane-dense hop
        (2, 12, 64, 16, 8),       # multi-tile + masked tail frames, fused trim
        (2, 10, 48, 20, 512),     # hop divides neither L nor n_overlap: fallback trim
    ]
    for idx, (B, n_frame, n_fft, n_hop, mtf) in enumerate(configs):
        k_i = jax.random.fold_in(key, idx)
        x = jax.random.normal(k_i, (B, n_frame, n_fft), jnp.float32)
        y = jax.block_until_ready(fwd(x, n_fft, n_hop, mtf))
        ref = _ref_ola(x, n_fft, n_hop)
        assert y.shape == ref.shape, (y.shape, ref.shape)
        err = float(jnp.max(jnp.abs(y - ref)))
        assert err < 1e-5, err
    print("KERNEL_OK")
</pallas_src>

<mosaic_0001>
module attributes {stable_mosaic.version = 11 : i64} {
  func.func @_ola_kernel(%arg0: i32, %arg1: i32, %arg2: memref<1x16x512xf32, #tpu.memory_space<vmem>>, %arg3: memref<1x13x128xf32, #tpu.memory_space<vmem>>, %arg4: memref<19x128xf32, #tpu.memory_space<vmem>>) attributes {dimension_semantics = [#tpu.dimension_semantics<parallel>, #tpu.dimension_semantics<arbitrary>], iteration_bounds = array<i64: 2, 1>, scalar_prefetch = 0 : i64, scratch_operands = 1 : i64, tpu.core_type = #tpu.core_type<tc>, window_params = [{transform_indices = @transform_0, window_bounds = array<i64: 1, 16, 512>}, {transform_indices = @transform_1, window_bounds = array<i64: 1, 13, 128>}]} {
    %c0_i32 = arith.constant 0 : i32
    %0 = arith.cmpi eq, %arg1, %c0_i32 : i32
    %1 = arith.extui %0 : i1 to i32
    %c0_i32_0 = arith.constant 0 : i32
    %2 = arith.cmpi ne, %1, %c0_i32_0 : i32
    scf.if %2 {
      %cst = arith.constant 0.000000e+00 : f32
      %40 = vector.broadcast %cst : f32 to vector<19x128xf32>
      %c0_20 = arith.constant 0 : index
      %c0_21 = arith.constant 0 : index
      %41 = vector.load %arg4[%c0_20, %c0_21] : memref<19x128xf32, #tpu.memory_space<vmem>>, vector<19x128xf32>
      tpu.vector_store %arg4[%c0_20, %c0_21], %40 {strides = array<i32>} : memref<19x128xf32, #tpu.memory_space<vmem>>, vector<19x128xf32>,
    } else {
    }
    %c16_i32 = arith.constant 16 : i32
    %3 = arith.muli %arg1, %c16_i32 : i32
    %4 = tpu.assume_multiple %3, 16 : i32
    %c0 = arith.constant 0 : index
    %c0_1 = arith.constant 0 : index
    %c0_2 = arith.constant 0 : index
    %5 = vector.load %arg2[%c0, %c0_1, %c0_2] : memref<1x16x512xf32, #tpu.memory_space<vmem>>, vector<1x16x128xf32>
    %6 = vector.shape_cast %5 : vector<1x16x128xf32> to vector<16x128xf32>
    %c0_i32_3 = arith.constant 0 : i32
    %7 = arith.addi %4, %c0_i32_3 : i32
    %8 = arith.index_cast %7 : i32 to index
    %c0_4 = arith.constant 0 : index
    %9 = vector.load %arg4[%8, %c0_4] : memref<19x128xf32, #tpu.memory_space<vmem>>, vector<16x128xf32>
    %10 = arith.addf %9, %6 : vector<16x128xf32>
    %11 = arith.index_cast %7 : i32 to index
    %c0_5 = arith.constant 0 : index
    %12 = vector.load %arg4[%11, %c0_5] : memref<19x128xf32, #tpu.memory_space<vmem>>, vector<16x128xf32>
    tpu.vector_store %arg4[%11, %c0_5], %10 {strides = array<i32>} : memref<19x128xf32, #tpu.memory_space<vmem>>, vector<16x128xf32>,
    %c0_6 = arith.constant 0 : index
    %c0_7 = arith.constant 0 : index
    %c128 = arith.constant 128 : index
    %13 = vector.load %arg2[%c0_6, %c0_7, %c128] : memref<1x16x512xf32, #tpu.memory_space<vmem>>, vector<1x16x128xf32>
    %14 = vector.shape_cast %13 : vector<1x16x128xf32> to vector<16x128xf32>
    %c1_i32 = arith.constant 1 : i32
    %15 = arith.addi %4, %c1_i32 : i32
    %16 = arith.index_cast %15 : i32 to index
    %c0_8 = arith.constant 0 : index
    %17 = vector.load %arg4[%16, %c0_8] : memref<19x128xf32, #tpu.memory_space<vmem>>, vector<16x128xf32>
    %18 = arith.addf %17, %14 : vector<16x128xf32>
    %19 = arith.index_cast %15 : i32 to index
    %c0_9 = arith.constant 0 : index
    %20 = vector.load %arg4[%19, %c0_9] : memref<19x128xf32, #tpu.memory_space<vmem>>, vector<16x128xf32>
    tpu.vector_store %arg4[%19, %c0_9], %18 {strides = array<i32>} : memref<19x128xf32, #tpu.memory_space<vmem>>, vector<16x128xf32>,
    %c0_10 = arith.constant 0 : index
    %c0_11 = arith.constant 0 : index
    %c256 = arith.constant 256 : index
    %21 = vector.load %arg2[%c0_10, %c0_11, %c256] : memref<1x16x512xf32, #tpu.memory_space<vmem>>, vector<1x16x128xf32>
    %22 = vector.shape_cast %21 : vector<1x16x128xf32> to vector<16x128xf32>
    %c2_i32 = arith.constant 2 : i32
    %23 = arith.addi %4, %c2_i32 : i32
    %24 = arith.index_cast %23 : i32 to index
    %c0_12 = arith.constant 0 : index
    %25 = vector.load %arg4[%24, %c0_12] : memref<19x128xf32, #tpu.memory_space<vmem>>, vector<16x128xf32>
    %26 = arith.addf %25, %22 : vector<16x128xf32>
    %27 = arith.index_cast %23 : i32 to index
    %c0_13 = arith.constant 0 : index
    %28 = vector.load %arg4[%27, %c0_13] : memref<19x128xf32, #tpu.memory_space<vmem>>, vector<16x128xf32>
    tpu.vector_store %arg4[%27, %c0_13], %26 {strides = array<i32>} : memref<19x128xf32, #tpu.memory_space<vmem>>, vector<16x128xf32>,
    %c0_14 = arith.constant 0 : index
    %c0_15 = arith.constant 0 : index
    %c384 = arith.constant 384 : index
    %29 = vector.load %arg2[%c0_14, %c0_15, %c384] : memref<1x16x512xf32, #tpu.memory_space<vmem>>, vector<1x16x128xf32>
    %30 = vector.shape_cast %29 : vector<1x16x128xf32> to vector<16x128xf32>
    %c3_i32 = arith.constant 3 : i32
    %31 = arith.addi %4, %c3_i32 : i32
    %32 = arith.index_cast %31 : i32 to index
    %c0_16 = arith.constant 0 : index
    %33 = vector.load %arg4[%32, %c0_16] : memref<19x128xf32, #tpu.memory_space<vmem>>, vector<16x128xf32>
    %34 = arith.addf %33, %30 : vector<16x128xf32>
    %35 = arith.index_cast %31 : i32 to index
    %c0_17 = arith.constant 0 : index
    %36 = vector.load %arg4[%35, %c0_17] : memref<19x128xf32, #tpu.memory_space<vmem>>, vector<16x128xf32>
    tpu.vector_store %arg4[%35, %c0_17], %34 {strides = array<i32>} : memref<19x128xf32, #tpu.memory_space<vmem>>, vector<16x128xf32>,
    %c0_i32_18 = arith.constant 0 : i32
    %37 = arith.cmpi eq, %arg1, %c0_i32_18 : i32
    %38 = arith.extui %37 : i1 to i32
    %c0_i32_19 = arith.constant 0 : i32
    %39 = arith.cmpi ne, %38, %c0_i32_19 : i32
    scf.if %39 {
      %c3 = arith.constant 3 : index
      %c0_20 = arith.constant 0 : index
      %40 = vector.load %arg4[%c3, %c0_20] : memref<19x128xf32, #tpu.memory_space<vmem>>, vector<13x128xf32>
      %c0_21 = arith.constant 0 : index
      %c0_22 = arith.constant 0 : index
      %c0_23 = arith.constant 0 : index
      %41 = vector.load %arg3[%c0_21, %c0_22, %c0_23] : memref<1x13x128xf32, #tpu.memory_space<vmem>>, vector<1x13x128xf32>
      %42 = vector.shape_cast %41 : vector<1x13x128xf32> to vector<13x128xf32>
      %43 = vector.shape_cast %40 : vector<13x128xf32> to vector<1x13x128xf32>
      tpu.vector_store %arg3[%c0_21, %c0_22, %c0_23], %43 {strides = array<i32>} : memref<1x13x128xf32, #tpu.memory_space<vmem>>, vector<1x13x128xf32>,
    } else {
    }
    return
  }
  func.func @transform_0(%arg0: i32, %arg1: i32) -> (i32, i32, i32) {
    %c0_i32 = arith.constant 0 : i32
    %c0_i32_0 = arith.constant 0 : i32
    return %arg0, %arg1, %c0_i32 : i32, i32, i32
  }
  func.func @transform_1(%arg0: i32, %arg1: i32) -> (i32, i32, i32) {
    %c0_i32 = arith.constant 0 : i32
    %c0_i32_0 = arith.constant 0 : i32
    %c0_i32_1 = arith.constant 0 : i32
    return %arg0, %c0_i32, %c0_i32_0 : i32, i32, i32
  }
}

</mosaic_0001>

<llo_original>
// kernel: ola_forward.1
$region0: #{ola_forward.1}
  #allocation0 [shape = 'u32[]', space=smem, size = 0x4, offset = 0x4, fixed_abs, tag = 'smem constant byte address 0x4 - core index']
  #allocation1 [shape = 'u32[72,128]{1,0:T(1,128)}', space=vmem, size = 0x9000, scoped, tag = 'internal scratch']
  #allocation2 [shape = 'f32[19,128]{1,0:T(8,128)}', space=vmem, size = 0x3000, scoped, tag = 'scratch operand']
  %s0 = inlined_call_operand.hbm [shape: f32[2,16,512], index: 0, kind: input, shape index: {}]
  %s1 = inlined_call_operand.vmem [shape: f32[2,13,128], index: 1, kind: output, shape index: {}]
  %s2 = sld [smem:[#allocation0]]
  $region49: #{ola_forward.1} parent=0
    _
  %s4 = ssub.s32 1, %s2
  %s5 = scalar_select 0, %s4, %s2
  $region1: #{ola_forward.1} parent=0
    #allocation3 [shape = 'u8[65536]{0}', space=vmem, size = 0x10000, scoped, tag = 'input window, operand 0']
    #allocation4 [shape = 's32[2]{0}', space=sflag, size = 0x8, scoped, tag = 'scoped memory for ola_forward.1']
    %6 = vsyncpa [#allocation4], 0
    %s7 = scalar_lea.sflag [#allocation4], 1
    %8 = vsyncpa %s7, 0
    loop: start=0, step=1, limit=4
    $region2: #{ola_forward.1} parent=1 // loop_pre_header
      _
    $region3: #{ola_forward.1} parent=1 // loop_header
      %s10 = sphi 0, %s14
      %p11 = scmp.ge.s32.totalorder %s10, 4
      %s17 = sphi 0, %s29
      %s18 = sphi 0, %s25
      %s19 = sphi 0, %s17
      %s20 = sphi 0, %s18
      %s21 = sphi 0, %s19
      %s22 = sphi 0, %s20
      %s34 = sphi 0, %s36
      %s37 = sphi 0, %s34
      %s38 = sphi 0, %s37
      %s54 = sphi 0, %s38
      %s60 = sphi 0, %s62
      %s63 = sphi 0, %s60
      %s64 = sphi 0, %s63
      %s80 = sphi 0, %s64
    $region4: #{ola_forward.1} parent=1 // loop_header_branch
      %13 = sbr.rel (%p11) target = $region8
    $region5: #{ola_forward.1} parent=1 // loop_body
      %s15 = ssub.s32 %s10, 1
      %s16 = ssub.s32 %s10, 2
      %s23 = sadd.s32 1, %s18
      %p24 = scmp.ge.s32.totalorder %s23, 1
      %s25 = scalar_select %p24, 0, %s23
      %s26 = sadd.s32 1, %s17
      %s27 = scalar_select %p24, %s26, %s17
      %p28 = scmp.ge.s32.totalorder %s27, 2
      %s29 = scalar_select %p28, 0, %s27
      %s30 = ssub.s32 %s17, %s29
      %s31 = ssub.s32 %s18, %s25
      %s32 = sor.u32 %s30, %s31
      %p33 = scmp.eq.s32.totalorder %s32, 0
      %s35 = sadd.s32 %s34, 1
      %s36 = scalar_select %p33, %s34, %s35
      %p39 = pneg %p33
      %p40 = scmp.eq.s32.totalorder %s10, 1
      %p41 = por %p39, %p40
      %p42 = scmp.ne.s32.totalorder %s34, %s37
      %p43 = scmp.eq.s32.totalorder %s10, 0
      %p44 = por %p42, %p43
      %p45 = scmp.ne.s32.totalorder %s34, %s37
      %p46 = scmp.eq.s32.totalorder %s15, 1
      %p47 = por %p45, %p46
      %p48 = scmp.ne.s32.totalorder %s37, %s38
      %p49 = scmp.eq.s32.totalorder %s15, 0
      %p50 = por %p48, %p49
      %p51 = scmp.ne.s32.totalorder %s37, %s38
      %p52 = scmp.eq.s32.totalorder %s16, 1
      %p53 = por %p51, %p52
      %p55 = scmp.ne.s32.totalorder %s38, %s54
      %p56 = scmp.eq.s32.totalorder %s16, 0
      %p57 = por %p55, %p56
      %s58 = ssub.s32 %s17, %s29
      %p59 = scmp.eq.s32.totalorder %s58, 0
      %s61 = sadd.s32 %s60, 1
      %s62 = scalar_select %p59, %s60, %s61
      %p65 = pneg %p59
      %p66 = scmp.eq.s32.totalorder %s10, 1
      %p67 = por %p65, %p66
      %p68 = scmp.ne.s32.totalorder %s60, %s63
      %p69 = scmp.eq.s32.totalorder %s10, 0
      %p70 = por %p68, %p69
      %p71 = scmp.ne.s32.totalorder %s60, %s63
      %p72 = scmp.eq.s32.totalorder %s15, 1
      %p73 = por %p71, %p72
      %p74 = scmp.ne.s32.totalorder %s63, %s64
      %p75 = scmp.eq.s32.totalorder %s15, 0
      %p76 = por %p74, %p75
      %p77 = scmp.ne.s32.totalorder %s63, %s64
      %p78 = scmp.eq.s32.totalorder %s16, 1
      %p79 = por %p77, %p78
      %p81 = scmp.ne.s32.totalorder %s64, %s80
      %p82 = scmp.eq.s32.totalorder %s16, 0
      %p83 = por %p81, %p82
      %p84 = scmp.le.s32.totalorder 1, %s10
      %p85 = scmp.lt.s32.totalorder %s10, 3
      %p86 = pnand %p84, %p85
      %p87 = pneg %p86
      // Predicated region
      $region9: #{ola_forward.1} parent=5 // pred_check
        _
      $region10: #{ola_forward.1} parent=5 // pred_check_branch
        %89 = sbr.rel (%p86) target = $region12
      $region11: #{ola_forward.1} parent=5 // pred_region
        %s90 = ssub.s32 %s10, 1
      $region12: #{ola_forward.1} parent=5 // pred_fallthru
        _
      %p91 = scmp.lt.s32.totalorder %s10, 2
      // Predicated region
      $region13: #{ola_forward.1} parent=5 // pred_check
        %p92 = pneg %p91
      $region14: #{ola_forward.1} parent=5 // pred_check_branch
        %94 = sbr.rel (%p92) target = $region16
      $region15: #{ola_forward.1} parent=5 // pred_region
        // Predicated region
        $region17: #{ola_forward.1} parent=15 // pred_check
          %p95 = pneg %p44
        $region18: #{ola_forward.1} parent=15 // pred_check_branch
          %97 = sbr.rel (%p95) target = $region20
        $region19: #{ola_forward.1} parent=15 // pred_region
          %s98 = sand.u32 %s34, 1
          %s99 = scalar_lea.sflag [#allocation4], %s98
          %s100 = sand.u32 %s34, 1
          %s101 = smul.addr %s100, 64
          %s102 = scalar_lea.vmem [#allocation3], %s101
          %s103 = smul.u32 2, %s18
          %105 = vsyncadd %s99, 0
          %s106 = smul.addr %s103, 4
          %s107 = smul.addr %s17, 8
          %s108 = sadd.s32 %s106, %s107
          %s109 = smul.addr %s108, 8
          %s110 = scalar_lea.hbm %s0, %s109
          %s111 = sshll.u32 %s110, 4
          %s112 = int_to_ptr.hbm [resolvable:$true] %s111
          %s113 = sshll.u32 %s102, 4
          %s114 = int_to_ptr.vmem [resolvable:$true] %s113
          %119 = dma.hbm_to_vmem [thread:$0]  %s112, 1024, %s114, %s99, 512, 512, 32
        $region20: #{ola_forward.1} parent=15 // pred_fallthru
          _
      $region16: #{ola_forward.1} parent=5 // pred_fallthru
        _
      %p120 = scmp.le.s32.totalorder 1, %s10
      %p121 = scmp.lt.s32.totalorder %s10, 3
      %p122 = pnand %p120, %p121
      %p123 = pneg %p122
      // Predicated region
      $region21: #{ola_forward.1} parent=5 // pred_check
        _
      $region22: #{ola_forward.1} parent=5 // pred_check_branch
        %125 = sbr.rel (%p122) target = $region24
      $region23: #{ola_forward.1} parent=5 // pred_region
        %s126 = ssub.s32 %s10, 1
        %s127 = sand.u32 %s37, 1
        %s128 = scalar_lea.sflag [#allocation4], %s127
        %s129 = sand.u32 %s37, 1
        %s130 = smul.addr %s129, 64
        %s131 = scalar_lea.vmem [#allocation3], %s130
        // Predicated region
        $region25: #{ola_forward.1} parent=23 // pred_check
          %p132 = pneg %p50
        $region26: #{ola_forward.1} parent=23 // pred_check_branch
          %134 = sbr.rel (%p132) target = $region28
        $region27: #{ola_forward.1} parent=23 // pred_region
          %136 = dma.done %s128, 1024
        $region28: #{ola_forward.1} parent=23 // pred_fallthru
          _
        %s137 = sand.u32 %s37, 1
        %s138 = scalar_lea.sflag [#allocation4], %s137
        %s139 = sand.u32 %s37, 1
        %s140 = smul.addr %s139, 64
        %s141 = scalar_lea.vmem [#allocation3], %s140
        %p142 = pneg %p50
        %p143 = pneg %p47
        %p144 = pneg %p76
        %p145 = pneg %p73
        %p146 = scmp.lt.s32.totalorder %s19, 1
        %s147 = scalar_select %p146, %s19, 1
        %s148 = smul.addr %s147, 2
        %s149 = smul.addr %s148, 8
        %s150 = scalar_lea.vmem %s1, %s149
        %s151 = smul.u32 2, %s20
        %p152 = scmp.lt.s32.totalorder %s19, 1
        %s153 = scalar_select %p152, %s19, 1
        %s154 = smul.addr %s153, 2
        %s155 = smul.addr %s154, 8
        %s156 = scalar_lea.vmem %s1, %s155
        %p157 = scmp.eq.s32.totalorder %s20, 0
        // Predicated region
        $region29: #{ola_forward.1} parent=23 // pred_check
          %p158 = pneg %p157
        $region30: #{ola_forward.1} parent=23 // pred_check_branch
          %160 = sbr.rel (%p158) target = $region32
        $region31: #{ola_forward.1} parent=23 // pred_region
          %161 = vst [vmem:[#allocation2] sm:$0xff] 0.0
          %162 = vst [vmem:[#allocation2 + $0x8] sm:$0xff] 0.0
          %163 = vst [vmem:[#allocation2 + $0x10] sm:$0x7] 0.0
        $region32: #{ola_forward.1} parent=23 // pred_fallthru
          _
        %s164 = smul.u32 %s20, 16
        %v165 = vld [vmem:[%s131] sm:$0xff]
        %v166 = vld [vmem:[%s131 + $0x20] sm:$0xff]
        %s167 = scalar_lea.vmem [#allocation2], %s164
        %v168 = vld [vmem:[%s167] sm:$0xff]
        %v169 = vld [vmem:[%s167 + $0x8] sm:$0xff]
        %v170 = vadd.f32 %v168, %v165
        %v171 = vadd.f32 %v169, %v166
        %172 = vst [vmem:[%s167] sm:$0xff] %v170
        %173 = vst [vmem:[%s167 + $0x8] sm:$0xff] %v171
        %v174 = vld [vmem:[%s131 + $0x8] sm:$0xff]
        %v175 = vld [vmem:[%s131 + $0x28] sm:$0xff]
        %s176 = sadd.s32 %s164, 1
        %s177 = scalar_lea.vmem [#allocation2], %s176
        %v178 = vld [vmem:[%s177] sm:$0xff]
        %v179 = vld [vmem:[%s177 + $0x8] sm:$0xff]
        %v180 = vadd.f32 %v178, %v174
        %v181 = vadd.f32 %v179, %v175
        %182 = vst [vmem:[%s177] sm:$0xff] %v180
        %183 = vst [vmem:[%s177 + $0x8] sm:$0xff] %v181
        %v184 = vld [vmem:[%s131 + $0x10] sm:$0xff]
        %v185 = vld [vmem:[%s131 + $0x30] sm:$0xff]
        %s186 = sadd.s32 %s164, 2
        %s187 = scalar_lea.vmem [#allocation2], %s186
        %v188 = vld [vmem:[%s187] sm:$0xff]
        %v189 = vld [vmem:[%s187 + $0x8] sm:$0xff]
        %v190 = vadd.f32 %v188, %v184
        %v191 = vadd.f32 %v189, %v185
        %192 = vst [vmem:[%s187] sm:$0xff] %v190
        %193 = vst [vmem:[%s187 + $0x8] sm:$0xff] %v191
        %v194 = vld [vmem:[%s131 + $0x18] sm:$0xff]
        %v195 = vld [vmem:[%s131 + $0x38] sm:$0xff]
        %s196 = sadd.s32 %s164, 3
        %s197 = scalar_lea.vmem [#allocation2], %s196
        %v198 = vld [vmem:[%s197] sm:$0xff]
        %v199 = vld [vmem:[%s197 + $0x8] sm:$0xff]
        %v200 = vadd.f32 %v198, %v194
        %v201 = vadd.f32 %v199, %v195
        %202 = vst [vmem:[%s197] sm:$0xff] %v200
        %203 = vst [vmem:[%s197 + $0x8] sm:$0xff] %v201
        // Predicated region
        $region33: #{ola_forward.1} parent=23 // pred_check
          %p204 = pneg %p157
        $region34: #{ola_forward.1} parent=23 // pred_check_branch
          %206 = sbr.rel (%p204) target = $region36
        $region35: #{ola_forward.1} parent=23 // pred_region
          %v207 = vld [vmem:[#allocation2 + $0x3] sm:$0xff]
          %v208 = vld [vmem:[#allocation2 + $0xb] sm:$0x1f]
          %209 = vst [vmem:[%s156] sm:$0xff] %v207
          %210 = vst [vmem:[%s156 + $0x8] sm:$0x1f] %v208
        $region36: #{ola_forward.1} parent=23 // pred_fallthru
          _
        %p211 = scmp.lt.s32.totalorder %s19, 1
        %s212 = scalar_select %p211, %s19, 1
        %s213 = smul.addr %s212, 2
        %s214 = smul.addr %s213, 8
        %s215 = scalar_lea.vmem %s1, %s214
        // Predicated region
        $region37: #{ola_forward.1} parent=23 // pred_check
          %p216 = pneg %p73
        $region38: #{ola_forward.1} parent=23 // pred_check_branch
          %218 = sbr.rel (%p216) target = $region40
        $region39: #{ola_forward.1} parent=23 // pred_region
          _
        $region40: #{ola_forward.1} parent=23 // pred_fallthru
          _
      $region24: #{ola_forward.1} parent=5 // pred_fallthru
        _
      %p219 = scmp.le.s32.totalorder 2, %s10
      // Predicated region
      $region41: #{ola_forward.1} parent=5 // pred_check
        %p220 = pneg %p219
      $region42: #{ola_forward.1} parent=5 // pred_check_branch
        %222 = sbr.rel (%p220) target = $region44
      $region43: #{ola_forward.1} parent=5 // pred_region
        %s223 = ssub.s32 %s10, 2
        // Predicated region
        $region45: #{ola_forward.1} parent=43 // pred_check
          %p224 = pneg %p79
        $region46: #{ola_forward.1} parent=43 // pred_check_branch
          %226 = sbr.rel (%p224) target = $region48
        $region47: #{ola_forward.1} parent=43 // pred_region
          %p227 = scmp.lt.s32.totalorder %s21, 1
          %s228 = scalar_select %p227, %s21, 1
          %s229 = smul.addr %s228, 2
          %s230 = smul.addr %s229, 8
          %s231 = scalar_lea.vmem %s1, %s230
        $region48: #{ola_forward.1} parent=43 // pred_fallthru
          _
      $region44: #{ola_forward.1} parent=5 // pred_fallthru
        _
    $region6: #{ola_forward.1} parent=1 // loop_footer
      %s14 = sadd.s32 1, %s10
    $region7: #{ola_forward.1} parent=1 // loop_footer_branch
      %9 = sbr.rel target = $region3
    $region8: #{ola_forward.1} parent=1 // loop_exit
      _
    %232 = vsyncpa [#allocation4], 1
    %s233 = scalar_lea.sflag [#allocation4], 1
    %234 = vsyncpa %s233, 1

</llo_original>
